<compile_context>
chip_gen: v7x
topology: tpu7x:2x2x1
jax: 0.10.0
libtpu: 0.0.40
codegen_flags: <defaults>
</compile_context>

<pallas_src>
import jax
import jax.numpy as jnp
import numpy as np
from jax.experimental import pallas as pl
from jax.experimental.pallas import tpu as pltpu

MAX_ARITY = 6  # hard-coded in HSimplE


def _round_up(n, m):
    return ((n + m - 1) // m) * m


# ----------------------------------------------------------------------------
# Pallas kernel 1: HSimplE scoring (the 'kg' mode hot path)
#   score_b = sum_d ( prod_i shift(E[i,b], (i+1)*D/6)*ms[i,b] + bs[i,b] ) * r[b,d]
# ----------------------------------------------------------------------------
def _hsimple_kernel(r_ref, e_ref, ms_ref, bs_ref, out_ref):
    _, D = r_ref.shape
    arity = e_ref.shape[0]
    x = None
    for i in range(arity):  # static, fully unrolled (arity is tiny)
        v = e_ref[i]  # (TB, D)
        sh = int((i + 1) * D / MAX_ARITY) % D
        if sh != 0:
            # torch: cat((v[:, sh:], v[:, :sh]), dim=1) == left-rotate by sh
            # == roll right by (D - sh); lowers to an XLU lane rotate.
            v = pltpu.roll(v, D - sh, 1)
        e = v * ms_ref[i] + bs_ref[i]          # (TB, D) * (TB, 1) + (TB, 1)
        x = e if i == 0 else x * e
    x = x * r_ref[...]
    # hidden_drop: identity in inference mode
    out_ref[...] = jnp.sum(x, axis=1, keepdims=True)


def hsimple_forward(r, E_t, ms, bs, *, block_b=512):
    """r: (B, D), E_t: (arity, B, D), ms/bs: (B, arity) -> (B,) scores."""
    arity, B, D = E_t.shape
    ms_t = jnp.transpose(ms)[:, :, None]   # (arity, B, 1)
    bs_t = jnp.transpose(bs)[:, :, None]   # (arity, B, 1)

    TB = min(block_b, _round_up(B, 8))
    B_pad = _round_up(B, TB)
    if B_pad != B:
        pad = B_pad - B
        r = jnp.pad(r, ((0, pad), (0, 0)))
        E_t = jnp.pad(E_t, ((0, 0), (0, pad), (0, 0)))
        ms_t = jnp.pad(ms_t, ((0, 0), (0, pad), (0, 0)))
        bs_t = jnp.pad(bs_t, ((0, 0), (0, pad), (0, 0)))

    out = pl.pallas_call(
        _hsimple_kernel,
        grid=(B_pad // TB,),
        out_shape=jax.ShapeDtypeStruct((B_pad, 1), jnp.float32),
        in_specs=[
            pl.BlockSpec((TB, D), lambda b: (b, 0)),
            pl.BlockSpec((arity, TB, D), lambda b: (0, b, 0)),
            pl.BlockSpec((arity, TB, 1), lambda b: (0, b, 0)),
            pl.BlockSpec((arity, TB, 1), lambda b: (0, b, 0)),
        ],
        out_specs=pl.BlockSpec((TB, 1), lambda b: (b, 0)),
        compiler_params=pltpu.CompilerParams(
            dimension_semantics=("parallel",),
            vmem_limit_bytes=48 * 1024 * 1024,
        ),
    )(r, E_t, ms_t, bs_t)
    return out[:B, 0]


# ----------------------------------------------------------------------------
# Pallas kernel 2: check-in similarity hot path
#   user_emb = x[user] + x[time1] + x[time2]
#   sim = (user_emb @ poi_emb.T) / (||user_emb|| * ||poi_emb||.T)
# POI side is pre-normalized / pre-transposed / bf16 in the wrapper; the kernel
# normalizes the user tile via rsqrt and does a single MXU matmul.
# ----------------------------------------------------------------------------
def _checkin_sim_kernel(xu_ref, xt1_ref, xt2_ref, pt_ref, out_ref):
    u = xu_ref[...] + xt1_ref[...] + xt2_ref[...]                      # (TU, D) f32
    inv = jax.lax.rsqrt(jnp.sum(u * u, axis=1, keepdims=True))          # (TU, 1)
    un = (u * inv).astype(jnp.bfloat16)                                 # (TU, D) bf16
    out_ref[...] = jnp.dot(un, pt_ref[...],
                           preferred_element_type=jnp.float32)          # (TU, TP)


def checkin_similarity(x_user, x_t1, x_t2, poi_emb, *, block_u=256, block_p=512):
    U, D = x_user.shape
    P = poi_emb.shape[0]

    # Normalize POIs once (O(P*D)), transpose to (D, P) for a canonical
    # (TU, D) x (D, TP) matmul, cast to bf16 to halve the table DMA.
    inv_pn = jax.lax.rsqrt(jnp.sum(poi_emb * poi_emb, axis=1, keepdims=True))
    poi_nt = jnp.transpose(poi_emb * inv_pn).astype(jnp.bfloat16)       # (D, P)

    TU = min(block_u, _round_up(U, 8))
    TP = min(block_p, _round_up(P, 128))
    U_pad = _round_up(U, TU)
    P_pad = _round_up(P, TP)
    if U_pad != U:
        pad = U_pad - U
        x_user = jnp.pad(x_user, ((0, pad), (0, 0)))
        x_t1 = jnp.pad(x_t1, ((0, pad), (0, 0)))
        x_t2 = jnp.pad(x_t2, ((0, pad), (0, 0)))
    if P_pad != P:
        poi_nt = jnp.pad(poi_nt, ((0, 0), (0, P_pad - P)))

    out = pl.pallas_call(
        _checkin_sim_kernel,
        grid=(U_pad // TU, P_pad // TP),
        out_shape=jax.ShapeDtypeStruct((U_pad, P_pad), jnp.float32),
        in_specs=[
            pl.BlockSpec((TU, D), lambda ui, pi: (ui, 0)),
            pl.BlockSpec((TU, D), lambda ui, pi: (ui, 0)),
            pl.BlockSpec((TU, D), lambda ui, pi: (ui, 0)),
            pl.BlockSpec((D, TP), lambda ui, pi: (0, pi)),
        ],
        out_specs=pl.BlockSpec((TU, TP), lambda ui, pi: (ui, pi)),
        compiler_params=pltpu.CompilerParams(
            dimension_semantics=("parallel", "parallel"),
            vmem_limit_bytes=48 * 1024 * 1024,
        ),
    )(x_user, x_t1, x_t2, poi_nt)
    return out[:U, :P]


# ----------------------------------------------------------------------------
# HKGAT wrapper (parameter setup + gathers are plain-JAX glue)
# ----------------------------------------------------------------------------
class HKGATPallas:
    def __init__(self, key, entity_num, relation_num, emb_dim, poi_start, poi_end):
        k1, k2 = jax.random.split(key)
        # E.weight.data = torch.randn(entity_num + 1, emb_dim)
        self.E_weight = jax.random.normal(k1, (entity_num + 1, emb_dim), jnp.float32)
        # R.weight.data = torch.randn(relation_num, rel_emb_dim); rel_emb_dim == emb_dim
        self.R_weight = jax.random.normal(k2, (relation_num, emb_dim), jnp.float32)
        # torch.range is end-inclusive
        self.poi_index = jnp.arange(poi_start, poi_end + 1, dtype=jnp.int32)

    def forward(self, index, mode, ms=None, bs=None):
        if mode == "kg":
            r = self.R_weight[index[:, 0]]            # (B, D)
            # gather entities already transposed -> (arity, B, D), avoiding an
            # extra full-tensor XLA transpose of the dominant input
            E_t = self.E_weight[index[:, 1:].T]       # (arity, B, D)
            return hsimple_forward(r, E_t, ms, bs)
        elif mode in ("train_gat_check_in", "test_gat_check_in"):
            # TODO(synk): the GAT stack (torch_geometric GATConv/GCNConv/HypergraphConv
            # message passing) has no clean Pallas equivalent here; we use the entity
            # embedding table directly as `x` and implement the similarity hot path.
            x = self.E_weight
            xu = x[index[:, 0]]
            xt1 = x[index[:, 1]]
            xt2 = x[index[:, 2]]
            poi_emb = x[self.poi_index]
            return checkin_similarity(xu, xt1, xt2, poi_emb)
        else:
            # TODO(synk): 'train_gat_friendship' / 'predict_friendship' depend entirely
            # on the torch_geometric GAT stack and are not implemented.
            raise NotImplementedError(mode)


# ----------------------------------------------------------------------------
# Pure numpy references (mirror torch semantics) for validation
# ----------------------------------------------------------------------------
def hsimple_ref_np(r, E, ms, bs):
    r = np.asarray(r); E = np.asarray(E); ms = np.asarray(ms); bs = np.asarray(bs)
    D = r.shape[1]
    x = None
    for i in range(E.shape[1]):
        v = E[:, i]
        sh = int((i + 1) * D / MAX_ARITY)
        shifted = np.concatenate([v[:, sh:], v[:, :sh]], axis=1)
        e = shifted * ms[:, i:i + 1] + bs[:, i:i + 1]
        x = e if i == 0 else x * e
    x = x * r
    return np.sum(x, axis=1)


def checkin_ref_np(x, index, poi_index):
    x = np.asarray(x); index = np.asarray(index); poi_index = np.asarray(poi_index)
    user_emb = x[index[:, 0]] + x[index[:, 1]] + x[index[:, 2]]
    poi_emb = x[poi_index]
    un = np.linalg.norm(user_emb, axis=1, keepdims=True)
    pn = np.linalg.norm(poi_emb, axis=1, keepdims=True)
    return (user_emb @ poi_emb.T) / (un * pn.T)


if __name__ == "__main__":
    key = jax.random.PRNGKey(0)
    k_model, k_idx, k_ms, k_bs, k_chk = jax.random.split(key, 5)

    entity_num, relation_num = 32, 8
    emb_dim = 768           # divisible by 6 -> 128-aligned HSimplE shifts
    batch, arity = 8, 6
    poi_start, poi_end = 10, 25

    model = HKGATPallas(k_model, entity_num, relation_num, emb_dim, poi_start, poi_end)

    # --- 'kg' mode ---
    kr, ke = jax.random.split(k_idx)
    rel_idx = jax.random.randint(kr, (batch, 1), 0, relation_num, dtype=jnp.int32)
    ent_idx = jax.random.randint(ke, (batch, arity), 0, entity_num + 1, dtype=jnp.int32)
    kg_index = jnp.concatenate([rel_idx, ent_idx], axis=1)          # (B, 1 + arity)
    ms = jax.random.normal(k_ms, (batch, arity), jnp.float32)
    bs = jax.random.normal(k_bs, (batch, arity), jnp.float32)

    kg_out = model.forward(kg_index, "kg", ms=ms, bs=bs)
    kg_out = jax.block_until_ready(kg_out)

    r_np = np.asarray(model.R_weight)[np.asarray(kg_index[:, 0])]
    E_np = np.asarray(model.E_weight)[np.asarray(kg_index[:, 1:])]
    kg_ref = hsimple_ref_np(r_np, E_np, ms, bs)
    tol = 1e-3 * float(np.max(np.abs(kg_ref))) + 1e-5
    np.testing.assert_allclose(np.asarray(kg_out), kg_ref, rtol=1e-3, atol=tol)

    # --- 'test_gat_check_in' mode (similarity hot path) ---
    chk_index = jax.random.randint(k_chk, (batch, 3), 0, entity_num + 1, dtype=jnp.int32)
    sim_out = model.forward(chk_index, "test_gat_check_in")
    sim_out = jax.block_until_ready(sim_out)
    sim_ref = checkin_ref_np(model.E_weight, chk_index, model.poi_index)
    np.testing.assert_allclose(np.asarray(sim_out), sim_ref, rtol=1e-2, atol=1e-2)

    print("KERNEL_OK")
</pallas_src>

<mosaic_0001>
module attributes {stable_mosaic.version = 11 : i64} {
  func.func @_hsimple_kernel(%arg0: i32, %arg1: memref<8x768xf32, #tpu.memory_space<vmem>>, %arg2: memref<6x8x768xf32, #tpu.memory_space<vmem>>, %arg3: memref<6x8x1xf32, #tpu.memory_space<vmem>>, %arg4: memref<6x8x1xf32, #tpu.memory_space<vmem>>, %arg5: memref<8x1xf32, #tpu.memory_space<vmem>>) attributes {dimension_semantics = [#tpu.dimension_semantics<parallel>], iteration_bounds = array<i64: 1>, scalar_prefetch = 0 : i64, scratch_operands = 0 : i64, tpu.core_type = #tpu.core_type<tc>, window_params = [{transform_indices = @transform_0, window_bounds = array<i64: 8, 768>}, {transform_indices = @transform_1, window_bounds = array<i64: 6, 8, 768>}, {transform_indices = @transform_2, window_bounds = array<i64: 6, 8, 1>}, {transform_indices = @transform_3, window_bounds = array<i64: 6, 8, 1>}, {transform_indices = @transform_4, window_bounds = array<i64: 8, 1>}]} {
    %c0 = arith.constant 0 : index
    %c0_0 = arith.constant 0 : index
    %c0_1 = arith.constant 0 : index
    %0 = vector.load %arg2[%c0, %c0_0, %c0_1] : memref<6x8x768xf32, #tpu.memory_space<vmem>>, vector<1x8x768xf32>
    %1 = vector.shape_cast %0 : vector<1x8x768xf32> to vector<8x768xf32>
    %c640_i32 = arith.constant 640 : i32
    %2 = tpu.dynamic_rotate %1 by %c640_i32 dim 1 : vector<8x768xf32>, i32 -> vector<8x768xf32>
    %c0_2 = arith.constant 0 : index
    %c0_3 = arith.constant 0 : index
    %c0_4 = arith.constant 0 : index
    %3 = vector.load %arg3[%c0_2, %c0_3, %c0_4] : memref<6x8x1xf32, #tpu.memory_space<vmem>>, vector<1x8x1xf32>
    %4 = vector.shape_cast %3 : vector<1x8x1xf32> to vector<8x1xf32>
    %5 = vector.broadcast %4 : vector<8x1xf32> to vector<8x768xf32>
    %6 = arith.mulf %2, %5 : vector<8x768xf32>
    %c0_5 = arith.constant 0 : index
    %c0_6 = arith.constant 0 : index
    %c0_7 = arith.constant 0 : index
    %7 = vector.load %arg4[%c0_5, %c0_6, %c0_7] : memref<6x8x1xf32, #tpu.memory_space<vmem>>, vector<1x8x1xf32>
    %8 = vector.shape_cast %7 : vector<1x8x1xf32> to vector<8x1xf32>
    %9 = vector.broadcast %8 : vector<8x1xf32> to vector<8x768xf32>
    %10 = arith.addf %6, %9 : vector<8x768xf32>
    %c1 = arith.constant 1 : index
    %c0_8 = arith.constant 0 : index
    %c0_9 = arith.constant 0 : index
    %11 = vector.load %arg2[%c1, %c0_8, %c0_9] : memref<6x8x768xf32, #tpu.memory_space<vmem>>, vector<1x8x768xf32>
    %12 = vector.shape_cast %11 : vector<1x8x768xf32> to vector<8x768xf32>
    %c512_i32 = arith.constant 512 : i32
    %13 = tpu.dynamic_rotate %12 by %c512_i32 dim 1 : vector<8x768xf32>, i32 -> vector<8x768xf32>
    %c1_10 = arith.constant 1 : index
    %c0_11 = arith.constant 0 : index
    %c0_12 = arith.constant 0 : index
    %14 = vector.load %arg3[%c1_10, %c0_11, %c0_12] : memref<6x8x1xf32, #tpu.memory_space<vmem>>, vector<1x8x1xf32>
    %15 = vector.shape_cast %14 : vector<1x8x1xf32> to vector<8x1xf32>
    %16 = vector.broadcast %15 : vector<8x1xf32> to vector<8x768xf32>
    %17 = arith.mulf %13, %16 : vector<8x768xf32>
    %c1_13 = arith.constant 1 : index
    %c0_14 = arith.constant 0 : index
    %c0_15 = arith.constant 0 : index
    %18 = vector.load %arg4[%c1_13, %c0_14, %c0_15] : memref<6x8x1xf32, #tpu.memory_space<vmem>>, vector<1x8x1xf32>
    %19 = vector.shape_cast %18 : vector<1x8x1xf32> to vector<8x1xf32>
    %20 = vector.broadcast %19 : vector<8x1xf32> to vector<8x768xf32>
    %21 = arith.addf %17, %20 : vector<8x768xf32>
    %22 = arith.mulf %10, %21 : vector<8x768xf32>
    %c2 = arith.constant 2 : index
    %c0_16 = arith.constant 0 : index
    %c0_17 = arith.constant 0 : index
    %23 = vector.load %arg2[%c2, %c0_16, %c0_17] : memref<6x8x768xf32, #tpu.memory_space<vmem>>, vector<1x8x768xf32>
    %24 = vector.shape_cast %23 : vector<1x8x768xf32> to vector<8x768xf32>
    %c384_i32 = arith.constant 384 : i32
    %25 = tpu.dynamic_rotate %24 by %c384_i32 dim 1 : vector<8x768xf32>, i32 -> vector<8x768xf32>
    %c2_18 = arith.constant 2 : index
    %c0_19 = arith.constant 0 : index
    %c0_20 = arith.constant 0 : index
    %26 = vector.load %arg3[%c2_18, %c0_19, %c0_20] : memref<6x8x1xf32, #tpu.memory_space<vmem>>, vector<1x8x1xf32>
    %27 = vector.shape_cast %26 : vector<1x8x1xf32> to vector<8x1xf32>
    %28 = vector.broadcast %27 : vector<8x1xf32> to vector<8x768xf32>
    %29 = arith.mulf %25, %28 : vector<8x768xf32>
    %c2_21 = arith.constant 2 : index
    %c0_22 = arith.constant 0 : index
    %c0_23 = arith.constant 0 : index
    %30 = vector.load %arg4[%c2_21, %c0_22, %c0_23] : memref<6x8x1xf32, #tpu.memory_space<vmem>>, vector<1x8x1xf32>
    %31 = vector.shape_cast %30 : vector<1x8x1xf32> to vector<8x1xf32>
    %32 = vector.broadcast %31 : vector<8x1xf32> to vector<8x768xf32>
    %33 = arith.addf %29, %32 : vector<8x768xf32>
    %34 = arith.mulf %22, %33 : vector<8x768xf32>
    %c3 = arith.constant 3 : index
    %c0_24 = arith.constant 0 : index
    %c0_25 = arith.constant 0 : index
    %35 = vector.load %arg2[%c3, %c0_24, %c0_25] : memref<6x8x768xf32, #tpu.memory_space<vmem>>, vector<1x8x768xf32>
    %36 = vector.shape_cast %35 : vector<1x8x768xf32> to vector<8x768xf32>
    %c256_i32 = arith.constant 256 : i32
    %37 = tpu.dynamic_rotate %36 by %c256_i32 dim 1 : vector<8x768xf32>, i32 -> vector<8x768xf32>
    %c3_26 = arith.constant 3 : index
    %c0_27 = arith.constant 0 : index
    %c0_28 = arith.constant 0 : index
    %38 = vector.load %arg3[%c3_26, %c0_27, %c0_28] : memref<6x8x1xf32, #tpu.memory_space<vmem>>, vector<1x8x1xf32>
    %39 = vector.shape_cast %38 : vector<1x8x1xf32> to vector<8x1xf32>
    %40 = vector.broadcast %39 : vector<8x1xf32> to vector<8x768xf32>
    %41 = arith.mulf %37, %40 : vector<8x768xf32>
    %c3_29 = arith.constant 3 : index
    %c0_30 = arith.constant 0 : index
    %c0_31 = arith.constant 0 : index
    %42 = vector.load %arg4[%c3_29, %c0_30, %c0_31] : memref<6x8x1xf32, #tpu.memory_space<vmem>>, vector<1x8x1xf32>
    %43 = vector.shape_cast %42 : vector<1x8x1xf32> to vector<8x1xf32>
    %44 = vector.broadcast %43 : vector<8x1xf32> to vector<8x768xf32>
    %45 = arith.addf %41, %44 : vector<8x768xf32>
    %46 = arith.mulf %34, %45 : vector<8x768xf32>
    %c4 = arith.constant 4 : index
    %c0_32 = arith.constant 0 : index
    %c0_33 = arith.constant 0 : index
    %47 = vector.load %arg2[%c4, %c0_32, %c0_33] : memref<6x8x768xf32, #tpu.memory_space<vmem>>, vector<1x8x768xf32>
    %48 = vector.shape_cast %47 : vector<1x8x768xf32> to vector<8x768xf32>
    %c128_i32 = arith.constant 128 : i32
    %49 = tpu.dynamic_rotate %48 by %c128_i32 dim 1 : vector<8x768xf32>, i32 -> vector<8x768xf32>
    %c4_34 = arith.constant 4 : index
    %c0_35 = arith.constant 0 : index
    %c0_36 = arith.constant 0 : index
    %50 = vector.load %arg3[%c4_34, %c0_35, %c0_36] : memref<6x8x1xf32, #tpu.memory_space<vmem>>, vector<1x8x1xf32>
    %51 = vector.shape_cast %50 : vector<1x8x1xf32> to vector<8x1xf32>
    %52 = vector.broadcast %51 : vector<8x1xf32> to vector<8x768xf32>
    %53 = arith.mulf %49, %52 : vector<8x768xf32>
    %c4_37 = arith.constant 4 : index
    %c0_38 = arith.constant 0 : index
    %c0_39 = arith.constant 0 : index
    %54 = vector.load %arg4[%c4_37, %c0_38, %c0_39] : memref<6x8x1xf32, #tpu.memory_space<vmem>>, vector<1x8x1xf32>
    %55 = vector.shape_cast %54 : vector<1x8x1xf32> to vector<8x1xf32>
    %56 = vector.broadcast %55 : vector<8x1xf32> to vector<8x768xf32>
    %57 = arith.addf %53, %56 : vector<8x768xf32>
    %58 = arith.mulf %46, %57 : vector<8x768xf32>
    %c5 = arith.constant 5 : index
    %c0_40 = arith.constant 0 : index
    %c0_41 = arith.constant 0 : index
    %59 = vector.load %arg2[%c5, %c0_40, %c0_41] : memref<6x8x768xf32, #tpu.memory_space<vmem>>, vector<1x8x768xf32>
    %60 = vector.shape_cast %59 : vector<1x8x768xf32> to vector<8x768xf32>
    %c5_42 = arith.constant 5 : index
    %c0_43 = arith.constant 0 : index
    %c0_44 = arith.constant 0 : index
    %61 = vector.load %arg3[%c5_42, %c0_43, %c0_44] : memref<6x8x1xf32, #tpu.memory_space<vmem>>, vector<1x8x1xf32>
    %62 = vector.shape_cast %61 : vector<1x8x1xf32> to vector<8x1xf32>
    %63 = vector.broadcast %62 : vector<8x1xf32> to vector<8x768xf32>
    %64 = arith.mulf %60, %63 : vector<8x768xf32>
    %c5_45 = arith.constant 5 : index
    %c0_46 = arith.constant 0 : index
    %c0_47 = arith.constant 0 : index
    %65 = vector.load %arg4[%c5_45, %c0_46, %c0_47] : memref<6x8x1xf32, #tpu.memory_space<vmem>>, vector<1x8x1xf32>
    %66 = vector.shape_cast %65 : vector<1x8x1xf32> to vector<8x1xf32>
    %67 = vector.broadcast %66 : vector<8x1xf32> to vector<8x768xf32>
    %68 = arith.addf %64, %67 : vector<8x768xf32>
    %69 = arith.mulf %58, %68 : vector<8x768xf32>
    %c0_48 = arith.constant 0 : index
    %c0_49 = arith.constant 0 : index
    %70 = vector.load %arg1[%c0_48, %c0_49] : memref<8x768xf32, #tpu.memory_space<vmem>>, vector<8x768xf32>
    %71 = arith.mulf %69, %70 : vector<8x768xf32>
    %cst = arith.constant dense<0.000000e+00> : vector<8xf32>
    %72 = vector.multi_reduction <add>, %71, %cst [1] : vector<8x768xf32> to vector<8xf32>
    %73 = vector.shape_cast %72 : vector<8xf32> to vector<8x1xf32>
    %c0_50 = arith.constant 0 : index
    %c0_51 = arith.constant 0 : index
    %74 = vector.load %arg5[%c0_50, %c0_51] : memref<8x1xf32, #tpu.memory_space<vmem>>, vector<8x1xf32>
    tpu.vector_store %arg5[%c0_50, %c0_51], %73 {strides = array<i32>} : memref<8x1xf32, #tpu.memory_space<vmem>>, vector<8x1xf32>,
    return
  }
  func.func @transform_0(%arg0: i32) -> (i32, i32) {
    %c0_i32 = arith.constant 0 : i32
    %c0_i32_0 = arith.constant 0 : i32
    return %arg0, %c0_i32 : i32, i32
  }
  func.func @transform_1(%arg0: i32) -> (i32, i32, i32) {
    %c0_i32 = arith.constant 0 : i32
    %c0_i32_0 = arith.constant 0 : i32
    %c0_i32_1 = arith.constant 0 : i32
    return %c0_i32, %arg0, %c0_i32_0 : i32, i32, i32
  }
  func.func @transform_2(%arg0: i32) -> (i32, i32, i32) {
    %c0_i32 = arith.constant 0 : i32
    %c0_i32_0 = arith.constant 0 : i32
    %c0_i32_1 = arith.constant 0 : i32
    return %c0_i32, %arg0, %c0_i32_0 : i32, i32, i32
  }
  func.func @transform_3(%arg0: i32) -> (i32, i32, i32) {
    %c0_i32 = arith.constant 0 : i32
    %c0_i32_0 = arith.constant 0 : i32
    %c0_i32_1 = arith.constant 0 : i32
    return %c0_i32, %arg0, %c0_i32_0 : i32, i32, i32
  }
  func.func @transform_4(%arg0: i32) -> (i32, i32) {
    %c0_i32 = arith.constant 0 : i32
    %c0_i32_0 = arith.constant 0 : i32
    return %arg0, %c0_i32 : i32, i32
  }
}

</mosaic_0001>

<llo_original>
// kernel: tpu_custom_call.1
$region0: #{tpu_custom_call.1}
  #allocation0 [shape = 'u32[]', space=smem, size = 0x4, offset = 0x4, fixed_abs, tag = 'smem constant byte address 0x4 - core index']
  #allocation1 [shape = 'u32[144,128]{1,0:T(1,128)}', space=vmem, size = 0x12000, scoped, tag = 'internal scratch']
  %s0 = inlined_call_operand.vmem [shape: f32[8,768], index: 0, kind: input, shape index: {}]
  %s1 = inlined_call_operand.hbm [shape: f32[6,8,768], index: 1, kind: input, shape index: {}]
  %s2 = inlined_call_operand.vmem [shape: f32[6,8,1], index: 2, kind: input, shape index: {}]
  %s3 = inlined_call_operand.vmem [shape: f32[6,8,1], index: 3, kind: input, shape index: {}]
  %s4 = inlined_call_operand.vmem [shape: f32[8,1], index: 4, kind: output, shape index: {}]
  %s5 = sld [smem:[#allocation0]]
  $region30: #{tpu_custom_call.1} parent=0
    _
  %s7 = ssub.s32 1, %s5
  %s8 = scalar_select 0, %s7, %s5
  $region1: #{tpu_custom_call.1} parent=0
    #allocation2 [shape = 'u8[147456]{0}', space=vmem, size = 0x24000, scoped, tag = 'input window, operand 1, single buffered']
    #allocation3 [shape = 's32[1]{0}', space=sflag, size = 0x4, scoped, tag = 'scoped memory for tpu_custom_call.1']
    %9 = vsyncpa [#allocation3], 0
    // Predicated region
    $region2: #{tpu_custom_call.1} parent=1 // pred_check
      _
    $region3: #{tpu_custom_call.1} parent=1 // pred_check_branch
      %11 = sbr.rel (0) target = $region5
    $region4: #{tpu_custom_call.1} parent=1 // pred_region
      _
    $region5: #{tpu_custom_call.1} parent=1 // pred_fallthru
      _
    // Predicated region
    $region6: #{tpu_custom_call.1} parent=1 // pred_check
      _
    $region7: #{tpu_custom_call.1} parent=1 // pred_check_branch
      %13 = sbr.rel (0) target = $region9
    $region8: #{tpu_custom_call.1} parent=1 // pred_region
      %s15 = ssub.s32 4608, 4608
      %16 = vsyncadd [#allocation3], %s15
      %s17 = sshll.u32 [#allocation2], 4
      %s18 = int_to_ptr.vmem [resolvable:$true] %s17
      %23 = dma.hbm_to_vmem [thread:$0]  %s1, 4608, %s18, [#allocation3], 768, 768, 48
    $region9: #{tpu_custom_call.1} parent=1 // pred_fallthru
      _
    // Predicated region
    $region10: #{tpu_custom_call.1} parent=1 // pred_check
      _
    $region11: #{tpu_custom_call.1} parent=1 // pred_check_branch
      %25 = sbr.rel (0) target = $region13
    $region12: #{tpu_custom_call.1} parent=1 // pred_region
      _
    $region13: #{tpu_custom_call.1} parent=1 // pred_fallthru
      _
    // Predicated region
    $region14: #{tpu_custom_call.1} parent=1 // pred_check
      _
    $region15: #{tpu_custom_call.1} parent=1 // pred_check_branch
      %27 = sbr.rel (0) target = $region17
    $region16: #{tpu_custom_call.1} parent=1 // pred_region
      _
    $region17: #{tpu_custom_call.1} parent=1 // pred_fallthru
      _
    // Predicated region
    $region18: #{tpu_custom_call.1} parent=1 // pred_check
      _
    $region19: #{tpu_custom_call.1} parent=1 // pred_check_branch
      %29 = sbr.rel (0) target = $region21
    $region20: #{tpu_custom_call.1} parent=1 // pred_region
      %30 = dma.done [#allocation3], 4608
    $region21: #{tpu_custom_call.1} parent=1 // pred_fallthru
      _
    %v31 = vld [vmem:[#allocation2] sm:$0xff]
    %v32 = vld [vmem:[#allocation2 + $0x8] sm:$0xff]
    %v33 = vld [vmem:[#allocation2 + $0x10] sm:$0xff]
    %v34 = vld [vmem:[#allocation2 + $0x18] sm:$0xff]
    %v35 = vld [vmem:[#allocation2 + $0x20] sm:$0xff]
    %v36 = vld [vmem:[#allocation2 + $0x28] sm:$0xff]
    %v37 = vld [vmem:[%s2] sm:$0xff]
    %39 = vset.pattern.permute.xlu0 0
    %40 = vperm.xlu0 %39, %v37
    %v41 = vpop.permute.xlu0 %40
    %v43 = vmul.f32 %v32, %v41
    %v44 = vmul.f32 %v33, %v41
    %v45 = vmul.f32 %v34, %v41
    %v46 = vmul.f32 %v35, %v41
    %v47 = vmul.f32 %v36, %v41
    %v48 = vmul.f32 %v31, %v41
    %v49 = vld [vmem:[%s3] sm:$0xff]
    %51 = vset.pattern.permute.xlu0 0
    %52 = vperm.xlu0 %51, %v49
    %v53 = vpop.permute.xlu0 %52
    %v55 = vadd.f32 %v43, %v53
    %v56 = vadd.f32 %v44, %v53
    %v57 = vadd.f32 %v45, %v53
    %v58 = vadd.f32 %v46, %v53
    %v59 = vadd.f32 %v47, %v53
    %v60 = vadd.f32 %v48, %v53
    %s61 = scalar_lea.vmem [#allocation2], 48
    %v62 = vld [vmem:[%s61] sm:$0xff]
    %v63 = vld [vmem:[%s61 + $0x8] sm:$0xff]
    %v64 = vld [vmem:[%s61 + $0x10] sm:$0xff]
    %v65 = vld [vmem:[%s61 + $0x18] sm:$0xff]
    %v66 = vld [vmem:[%s61 + $0x20] sm:$0xff]
    %v67 = vld [vmem:[%s61 + $0x28] sm:$0xff]
    %s68 = scalar_lea.vmem %s2, 8
    %v69 = vld [vmem:[%s68] sm:$0xff]
    %71 = vset.pattern.permute.xlu0 0
    %72 = vperm.xlu0 %71, %v69
    %v73 = vpop.permute.xlu0 %72
    %v75 = vmul.f32 %v64, %v73
    %v76 = vmul.f32 %v65, %v73
    %v77 = vmul.f32 %v66, %v73
    %v78 = vmul.f32 %v67, %v73
    %v79 = vmul.f32 %v62, %v73
    %v80 = vmul.f32 %v63, %v73
    %s81 = scalar_lea.vmem %s3, 8
    %v82 = vld [vmem:[%s81] sm:$0xff]
    %84 = vset.pattern.permute.xlu0 0
    %85 = vperm.xlu0 %84, %v82
    %v86 = vpop.permute.xlu0 %85
    %v88 = vadd.f32 %v75, %v86
    %v89 = vadd.f32 %v76, %v86
    %v90 = vadd.f32 %v77, %v86
    %v91 = vadd.f32 %v78, %v86
    %v92 = vadd.f32 %v79, %v86
    %v93 = vadd.f32 %v80, %v86
    %v94 = vmul.f32 %v55, %v88
    %v95 = vmul.f32 %v56, %v89
    %v96 = vmul.f32 %v57, %v90
    %v97 = vmul.f32 %v58, %v91
    %v98 = vmul.f32 %v59, %v92
    %v99 = vmul.f32 %v60, %v93
    %s100 = scalar_lea.vmem [#allocation2], 96
    %v101 = vld [vmem:[%s100] sm:$0xff]
    %v102 = vld [vmem:[%s100 + $0x8] sm:$0xff]
    %v103 = vld [vmem:[%s100 + $0x10] sm:$0xff]
    %v104 = vld [vmem:[%s100 + $0x18] sm:$0xff]
    %v105 = vld [vmem:[%s100 + $0x20] sm:$0xff]
    %v106 = vld [vmem:[%s100 + $0x28] sm:$0xff]
    %s107 = scalar_lea.vmem %s2, 16
    %v108 = vld [vmem:[%s107] sm:$0xff]
    %110 = vset.pattern.permute.xlu0 0
    %111 = vperm.xlu0 %110, %v108
    %v112 = vpop.permute.xlu0 %111
    %v114 = vmul.f32 %v104, %v112
    %v115 = vmul.f32 %v105, %v112
    %v116 = vmul.f32 %v106, %v112
    %v117 = vmul.f32 %v101, %v112
    %v118 = vmul.f32 %v102, %v112
    %v119 = vmul.f32 %v103, %v112
    %s120 = scalar_lea.vmem %s3, 16
    %v121 = vld [vmem:[%s120] sm:$0xff]
    %123 = vset.pattern.permute.xlu0 0
    %124 = vperm.xlu0 %123, %v121
    %v125 = vpop.permute.xlu0 %124
    %v127 = vadd.f32 %v114, %v125
    %v128 = vadd.f32 %v115, %v125
    %v129 = vadd.f32 %v116, %v125
    %v130 = vadd.f32 %v117, %v125
    %v131 = vadd.f32 %v118, %v125
    %v132 = vadd.f32 %v119, %v125
    %v133 = vmul.f32 %v94, %v127
    %v134 = vmul.f32 %v95, %v128
    %v135 = vmul.f32 %v96, %v129
    %v136 = vmul.f32 %v97, %v130
    %v137 = vmul.f32 %v98, %v131
    %v138 = vmul.f32 %v99, %v132
    %s139 = scalar_lea.vmem [#allocation2], 144
    %v140 = vld [vmem:[%s139] sm:$0xff]
    %v141 = vld [vmem:[%s139 + $0x8] sm:$0xff]
    %v142 = vld [vmem:[%s139 + $0x10] sm:$0xff]
    %v143 = vld [vmem:[%s139 + $0x18] sm:$0xff]
    %v144 = vld [vmem:[%s139 + $0x20] sm:$0xff]
    %v145 = vld [vmem:[%s139 + $0x28] sm:$0xff]
    %s146 = scalar_lea.vmem %s2, 24
    %v147 = vld [vmem:[%s146] sm:$0xff]
    %149 = vset.pattern.permute.xlu0 0
    %150 = vperm.xlu0 %149, %v147
    %v151 = vpop.permute.xlu0 %150
    %v153 = vmul.f32 %v144, %v151
    %v154 = vmul.f32 %v145, %v151
    %v155 = vmul.f32 %v140, %v151
    %v156 = vmul.f32 %v141, %v151
    %v157 = vmul.f32 %v142, %v151
    %v158 = vmul.f32 %v143, %v151
    %s159 = scalar_lea.vmem %s3, 24
    %v160 = vld [vmem:[%s159] sm:$0xff]
    %162 = vset.pattern.permute.xlu0 0
    %163 = vperm.xlu0 %162, %v160
    %v164 = vpop.permute.xlu0 %163
    %v166 = vadd.f32 %v153, %v164
    %v167 = vadd.f32 %v154, %v164
    %v168 = vadd.f32 %v155, %v164
    %v169 = vadd.f32 %v156, %v164
    %v170 = vadd.f32 %v157, %v164
    %v171 = vadd.f32 %v158, %v164
    %v172 = vmul.f32 %v133, %v166
    %v173 = vmul.f32 %v134, %v167
    %v174 = vmul.f32 %v135, %v168
    %v175 = vmul.f32 %v136, %v169
    %v176 = vmul.f32 %v137, %v170
    %v177 = vmul.f32 %v138, %v171
    %s178 = scalar_lea.vmem [#allocation2], 192
    %v179 = vld [vmem:[%s178] sm:$0xff]
    %v180 = vld [vmem:[%s178 + $0x8] sm:$0xff]
    %v181 = vld [vmem:[%s178 + $0x10] sm:$0xff]
    %v182 = vld [vmem:[%s178 + $0x18] sm:$0xff]
    %v183 = vld [vmem:[%s178 + $0x20] sm:$0xff]
    %v184 = vld [vmem:[%s178 + $0x28] sm:$0xff]
    %s185 = scalar_lea.vmem %s2, 32
    %v186 = vld [vmem:[%s185] sm:$0xff]
    %188 = vset.pattern.permute.xlu0 0
    %189 = vperm.xlu0 %188, %v186
    %v190 = vpop.permute.xlu0 %189
    %v192 = vmul.f32 %v184, %v190
    %v193 = vmul.f32 %v179, %v190
    %v194 = vmul.f32 %v180, %v190
    %v195 = vmul.f32 %v181, %v190
    %v196 = vmul.f32 %v182, %v190
    %v197 = vmul.f32 %v183, %v190
    %s198 = scalar_lea.vmem %s3, 32
    %v199 = vld [vmem:[%s198] sm:$0xff]
    %201 = vset.pattern.permute.xlu0 0
    %202 = vperm.xlu0 %201, %v199
    %v203 = vpop.permute.xlu0 %202
    %v205 = vadd.f32 %v192, %v203
    %v206 = vadd.f32 %v193, %v203
    %v207 = vadd.f32 %v194, %v203
    %v208 = vadd.f32 %v195, %v203
    %v209 = vadd.f32 %v196, %v203
    %v210 = vadd.f32 %v197, %v203
    %v211 = vmul.f32 %v172, %v205
    %v212 = vmul.f32 %v173, %v206
    %v213 = vmul.f32 %v174, %v207
    %v214 = vmul.f32 %v175, %v208
    %v215 = vmul.f32 %v176, %v209
    %v216 = vmul.f32 %v177, %v210
    %s217 = scalar_lea.vmem [#allocation2], 240
    %v218 = vld [vmem:[%s217] sm:$0xff]
    %v219 = vld [vmem:[%s217 + $0x8] sm:$0xff]
    %v220 = vld [vmem:[%s217 + $0x10] sm:$0xff]
    %v221 = vld [vmem:[%s217 + $0x18] sm:$0xff]
    %v222 = vld [vmem:[%s217 + $0x20] sm:$0xff]
    %v223 = vld [vmem:[%s217 + $0x28] sm:$0xff]
    %s224 = scalar_lea.vmem %s2, 40
    %v225 = vld [vmem:[%s224] sm:$0xff]
    %227 = vset.pattern.permute.xlu0 0
    %228 = vperm.xlu0 %227, %v225
    %v229 = vpop.permute.xlu0 %228
    %v231 = vmul.f32 %v218, %v229
    %v232 = vmul.f32 %v219, %v229
    %v233 = vmul.f32 %v220, %v229
    %v234 = vmul.f32 %v221, %v229
    %v235 = vmul.f32 %v222, %v229
    %v236 = vmul.f32 %v223, %v229
    %s237 = scalar_lea.vmem %s3, 40
    %v238 = vld [vmem:[%s237] sm:$0xff]
    %240 = vset.pattern.permute.xlu0 0
    %241 = vperm.xlu0 %240, %v238
    %v242 = vpop.permute.xlu0 %241
    %v244 = vadd.f32 %v231, %v242
    %v245 = vadd.f32 %v232, %v242
    %v246 = vadd.f32 %v233, %v242
    %v247 = vadd.f32 %v234, %v242
    %v248 = vadd.f32 %v235, %v242
    %v249 = vadd.f32 %v236, %v242
    %v250 = vmul.f32 %v211, %v244
    %v251 = vmul.f32 %v212, %v245
    %v252 = vmul.f32 %v213, %v246
    %v253 = vmul.f32 %v214, %v247
    %v254 = vmul.f32 %v215, %v248
    %v255 = vmul.f32 %v216, %v249
    %v256 = vld [vmem:[%s0] sm:$0xff]
    %v257 = vld [vmem:[%s0 + $0x8] sm:$0xff]
    %v258 = vld [vmem:[%s0 + $0x10] sm:$0xff]
    %v259 = vld [vmem:[%s0 + $0x18] sm:$0xff]
    %v260 = vld [vmem:[%s0 + $0x20] sm:$0xff]
    %v261 = vld [vmem:[%s0 + $0x28] sm:$0xff]
    %v262 = vmul.f32 %v250, %v256
    %v263 = vmul.f32 %v251, %v257
    %v264 = vmul.f32 %v252, %v258
    %v265 = vmul.f32 %v253, %v259
    %v266 = vmul.f32 %v254, %v260
    %v267 = vmul.f32 %v255, %v261
    %v268 = vadd.f32 %v262, %v263
    %v269 = vadd.f32 %v268, %v264
    %v270 = vadd.f32 %v269, %v265
    %v271 = vadd.f32 %v270, %v266
    %v272 = vadd.f32 %v271, %v267
    %273 = vadd.xlane.f32.xlu0 %v272
    %v274 = vpop.xlane.xlu0 %273
    %vm275 = vcmask 7168
    %276 = vst.msk [vmem:[%s4] sm:$0xff] %vm275, %v274
    // Predicated region
    $region22: #{tpu_custom_call.1} parent=1 // pred_check
      _
    $region23: #{tpu_custom_call.1} parent=1 // pred_check_branch
      %278 = sbr.rel (0) target = $region25
    $region24: #{tpu_custom_call.1} parent=1 // pred_region
      _
    $region25: #{tpu_custom_call.1} parent=1 // pred_fallthru
      _
    // Predicated region
    $region26: #{tpu_custom_call.1} parent=1 // pred_check
      _
    $region27: #{tpu_custom_call.1} parent=1 // pred_check_branch
      %280 = sbr.rel (0) target = $region29
    $region28: #{tpu_custom_call.1} parent=1 // pred_region
      _
    $region29: #{tpu_custom_call.1} parent=1 // pred_fallthru
      _
    %281 = vsyncpa [#allocation3], 1

</llo_original>
